<compile_context>
chip_gen: v5e
topology: v5e:2x2
jax: 0.10.0
libtpu: 0.0.40
codegen_flags: <defaults>
</compile_context>

<pallas_src>
import functools

import jax
import jax.numpy as jnp
from jax.experimental import pallas as pl
from jax.experimental.pallas import tpu as pltpu


_VMEM_LIMIT_BYTES = 48 * 1024 * 1024       # fits v7x (64 MiB phys) and v5e/v6e (128 MiB)
_FUSED_BUDGET_BYTES = 32 * 1024 * 1024     # conservative fused working-set budget
_FALLBACK_BUDGET_BYTES = 24 * 1024 * 1024  # conservative per-step two-pass budget


# ----------------------------- fused single-pass path ------------------------
def _fused_bin_kernel(x_ref, gamma_ref, beta_ref, o_ref, *, rho, eps):
    """Whole (N, Cg, HW) channel-group slab resident in VMEM: moments +
    rho-mix + affine in one shot (single HBM read and single write of x)."""
    x = x_ref[...].astype(jnp.float32)                              # (N, Cg, HW)
    n, _, hw = x.shape

    s = jnp.sum(x, axis=-1, keepdims=True)                          # (N, Cg, 1)
    mean_in = s * (1.0 / hw)
    mean_bn = jnp.sum(s, axis=0, keepdims=True) * (1.0 / (n * hw))  # (1, Cg, 1)

    # Shifted second moment (x is resident, so the extra pass is VALU-only and
    # costs no HBM traffic): avoids E[x^2]-E[x]^2 cancellation.
    d = x - mean_in
    var_in_b = jnp.sum(d * d, axis=-1, keepdims=True) * (1.0 / hw)  # biased IN var
    dm = mean_in - mean_bn
    # Exact decomposition of the biased batch variance from per-instance stats.
    var_bn = jnp.sum(var_in_b + dm * dm, axis=0, keepdims=True) * (1.0 / n)

    if hw > 1:
        var_in = var_in_b * (hw / (hw - 1.0))   # torch .var() default: unbiased
    else:
        var_in = var_in_b  # TODO(synk): torch yields nan/inf when H*W == 1
    inv_in = jax.lax.rsqrt(var_in + eps)        # (N, Cg, 1)
    inv_bn = jax.lax.rsqrt(var_bn + eps)        # (1, Cg, 1)

    g = gamma_ref[...].astype(jnp.float32)[None]   # (1, Cg, 1)
    b = beta_ref[...].astype(jnp.float32)[None]
    scale = g * (rho * inv_bn + (1.0 - rho) * inv_in)
    shift = b - g * (rho * mean_bn * inv_bn + (1.0 - rho) * mean_in * inv_in)
    o_ref[...] = (x * scale + shift).astype(o_ref.dtype)


def _pick_channel_group(N, C, HW, itemsize):
    """Largest channel-group Cg (multiple of 8 dividing C, or C itself) whose
    fused (N, Cg, HW) working set fits the VMEM budget; prefers >=2 grid steps
    so the channel axis can be split across TensorCores.  None -> fallback."""
    per_channel = N * HW * (4 * itemsize + 12)   # in/out double buffers + f32 temps
    max_cg = _FUSED_BUDGET_BYTES // per_channel
    if max_cg < 1:
        return None
    cands = [d for d in range(8, min(C, max_cg) + 1, 8) if C % d == 0]
    if C <= max_cg:
        cands.append(C)
    if not cands:
        return None
    multi = [d for d in cands if C // d >= 2]
    return max(multi) if multi else max(cands)


def _bin_fused(x3, gamma_c, beta_c, cg, rho, eps):
    N, C, HW = x3.shape
    kernel = functools.partial(_fused_bin_kernel, rho=float(rho), eps=float(eps))
    return pl.pallas_call(
        kernel,
        out_shape=jax.ShapeDtypeStruct((N, C, HW), x3.dtype),
        grid=(C // cg,),
        in_specs=[
            pl.BlockSpec((N, cg, HW), lambda j: (0, j, 0)),
            pl.BlockSpec((cg, 1), lambda j: (j, 0)),
            pl.BlockSpec((cg, 1), lambda j: (j, 0)),
        ],
        out_specs=pl.BlockSpec((N, cg, HW), lambda j: (0, j, 0)),
        compiler_params=pltpu.CompilerParams(
            dimension_semantics=("parallel",),
            vmem_limit_bytes=_VMEM_LIMIT_BYTES,
        ),
    )(x3, gamma_c, beta_c)


# ----------------------------- two-pass fallback path ------------------------
def _row_moments_kernel(x_ref, sum_ref, sq_ref, *, hw, tc, mask_cols):
    """Per-(n,c) sum / sum-of-squares over the spatial axis.  Column tiles are
    accumulated into a resident (tr, 1) f32 block; ragged column edges are
    zeroed in-kernel so no HBM-side padding copy is ever made."""
    @pl.when(pl.program_id(1) == 0)
    def _():
        sum_ref[...] = jnp.zeros_like(sum_ref)
        sq_ref[...] = jnp.zeros_like(sq_ref)

    x = x_ref[...].astype(jnp.float32)
    if mask_cols:
        col = jax.lax.broadcasted_iota(jnp.int32, x.shape, 1) + pl.program_id(1) * tc
        x = jnp.where(col < hw, x, 0.0)
    sum_ref[...] += jnp.sum(x, axis=-1, keepdims=True)
    sq_ref[...] += jnp.sum(x * x, axis=-1, keepdims=True)


def _affine_kernel(x_ref, a_ref, b_ref, o_ref):
    """o = x * A[row] + B[row]   (A/B fold BN + IN stats, rho, gamma, beta)."""
    x = x_ref[...].astype(jnp.float32)
    o_ref[...] = (x * a_ref[...] + b_ref[...]).astype(o_ref.dtype)


def _pick_fallback_tiles(NR, HW, max_block_elems):
    """(tr, tc): tr a multiple of 8 (or the full NR), tc the full HW whenever an
    (8, HW) slab fits (no column tiling), otherwise a multiple of 128.  Tiles
    are decoupled from array alignment; ragged edges handled by masked edge
    blocks (+ in-kernel column mask in pass 1)."""
    if 8 * HW <= max_block_elems:
        tc = HW
        tr = min((max_block_elems // HW) // 8 * 8, 256)  # 256 cap -> >=2 row blocks
    else:                                                 # for megacore on big NR
        tc = min(8192, max(128, (max_block_elems // 8) // 128 * 128))
        if tc >= HW:
            tc = HW
        tr = max(8, min((max_block_elems // tc) // 8 * 8, 256))
    if NR <= tr:
        tr = NR              # single full-extent row block (always layout-legal)
    return tr, tc


def _bin_fallback(x3, gamma_c, beta_c, rho, eps, max_block_elems=None):
    N, C, HW = x3.shape
    NR = N * C
    x2 = x3.reshape(NR, HW)
    itemsize = x2.dtype.itemsize
    if max_block_elems is None:
        # ~4 MiB f32 blocks: in/out double buffers + f32 temps stay well under
        # the explicit 48 MiB VMEM limit on every TPU generation.
        max_block_elems = _FALLBACK_BUDGET_BYTES // (4 * itemsize + 8)
    tr, tc = _pick_fallback_tiles(NR, HW, max_block_elems)
    grid = (pl.cdiv(NR, tr), pl.cdiv(HW, tc))
    mask_cols = (HW % tc) != 0

    # ---- pass 1: per-(n,c) first/second moments over H*W ----
    mom = functools.partial(_row_moments_kernel, hw=HW, tc=tc, mask_cols=mask_cols)
    row_sum, row_sq = pl.pallas_call(
        mom,
        out_shape=(jax.ShapeDtypeStruct((NR, 1), jnp.float32),
                   jax.ShapeDtypeStruct((NR, 1), jnp.float32)),
        grid=grid,
        in_specs=[pl.BlockSpec((tr, tc), lambda i, j: (i, j))],
        out_specs=(pl.BlockSpec((tr, 1), lambda i, j: (i, 0)),
                   pl.BlockSpec((tr, 1), lambda i, j: (i, 0))),
        compiler_params=pltpu.CompilerParams(
            dimension_semantics=("parallel", "arbitrary"),
            vmem_limit_bytes=_VMEM_LIMIT_BYTES,
        ),
    )(x2)

    # ---- tiny O(N*C) statistics math (negligible vs |x| HBM traffic) ----
    row_sum = row_sum.reshape(N, C)
    row_sq = row_sq.reshape(N, C)
    hw_f = jnp.float32(HW)
    nhw_f = jnp.float32(N * HW)

    mean_in = row_sum / hw_f
    # NOTE: E[x^2]-E[x]^2 in f32 is fine at activation scale; the fused path
    # (the common case) uses the shifted formulation.
    var_in = jnp.maximum(row_sq / hw_f - mean_in * mean_in, 0.0)
    if HW > 1:
        var_in = var_in * (hw_f / (hw_f - 1.0))          # torch .var(): unbiased
    mean_bn = jnp.sum(row_sum, axis=0, keepdims=True) / nhw_f          # (1, C)
    var_bn = jnp.maximum(
        jnp.sum(row_sq, axis=0, keepdims=True) / nhw_f - mean_bn * mean_bn, 0.0)

    inv_in = jax.lax.rsqrt(var_in + eps)
    inv_bn = jax.lax.rsqrt(var_bn + eps)
    g = gamma_c.reshape(1, C).astype(jnp.float32)
    b = beta_c.reshape(1, C).astype(jnp.float32)
    a_rows = g * (rho * inv_bn + (1.0 - rho) * inv_in)                 # (N, C)
    b_rows = b - g * (rho * mean_bn * inv_bn + (1.0 - rho) * mean_in * inv_in)
    a2 = a_rows.reshape(NR, 1)
    b2 = b_rows.reshape(NR, 1)

    # ---- pass 2: normalize + rho-mix + affine fused as one per-row affine ----
    out2 = pl.pallas_call(
        _affine_kernel,
        out_shape=jax.ShapeDtypeStruct((NR, HW), x2.dtype),
        grid=grid,
        in_specs=[pl.BlockSpec((tr, tc), lambda i, j: (i, j)),
                  pl.BlockSpec((tr, 1), lambda i, j: (i, 0)),
                  pl.BlockSpec((tr, 1), lambda i, j: (i, 0))],
        out_specs=pl.BlockSpec((tr, tc), lambda i, j: (i, j)),
        compiler_params=pltpu.CompilerParams(
            dimension_semantics=("parallel", "parallel"),
            vmem_limit_bytes=_VMEM_LIMIT_BYTES,
        ),
    )(x2, a2, b2)
    return out2.reshape(N, C, HW)


# ----------------------------- public wrapper --------------------------------
@functools.partial(jax.jit, static_argnames=("rho", "eps", "force_fallback"))
def batch_instance_norm(x, gamma, beta, *, rho=0.5, eps=1e-5, force_fallback=False):
    """Training-mode BatchInstanceNorm forward (NCHW), PyTorch-equivalent."""
    # TODO(synk): running_mean/running_var EMA update and the eval-mode branch
    # (which reads those running stats) are stateful module bookkeeping left
    # outside the kernel; the output matches the PyTorch training forward.
    N, C, H, W = x.shape
    HW = H * W
    x3 = x.reshape(N, C, HW)                       # free view: collapse H, W
    gamma_c = gamma.reshape(C, 1).astype(jnp.float32)
    beta_c = beta.reshape(C, 1).astype(jnp.float32)

    cg = None if force_fallback else _pick_channel_group(N, C, HW, x.dtype.itemsize)
    if cg is not None:
        out3 = _bin_fused(x3, gamma_c, beta_c, cg, rho, eps)
    else:
        out3 = _bin_fallback(x3, gamma_c, beta_c, rho, eps)
    return out3.reshape(N, C, H, W)


# ----------------------------- pure-JAX reference -----------------------------
def _reference_bin(x, gamma, beta, rho, eps):
    mean_bn = jnp.mean(x, axis=(0, 2, 3), keepdims=True)
    var_bn = jnp.var(x, axis=(0, 2, 3), keepdims=True)            # unbiased=False
    x_bn = (x - mean_bn) / jnp.sqrt(var_bn + eps)
    mean_in = jnp.mean(x, axis=(2, 3), keepdims=True)
    var_in = jnp.var(x, axis=(2, 3), keepdims=True, ddof=1)       # torch default unbiased
    x_in = (x - mean_in) / jnp.sqrt(var_in + eps)
    y = rho * x_bn + (1.0 - rho) * x_in
    return y * gamma + beta


if __name__ == "__main__":
    key = jax.random.PRNGKey(0)
    N, C, H, W = 2, 4, 16, 16
    x = jax.random.normal(key, (N, C, H, W), dtype=jnp.float32)
    gamma = jnp.ones((1, C, 1, 1), jnp.float32)     # module init: ones
    beta = jnp.zeros((1, C, 1, 1), jnp.float32)     # module init: zeros
    y_ref = _reference_bin(x, gamma, beta, 0.5, 1e-5)

    # 1) Fused single-pass path (the common case).
    y = batch_instance_norm(x, gamma, beta, rho=0.5, eps=1e-5)
    jax.block_until_ready(y)
    assert y.shape == x.shape and y.dtype == x.dtype
    err = float(jnp.max(jnp.abs(y - y_ref)))
    assert jnp.allclose(y, y_ref, atol=1e-4, rtol=1e-4), f"fused max_err={err}"

    # 2) Two-pass fallback path, forced at the same shape.
    y_fb = batch_instance_norm(x, gamma, beta, rho=0.5, eps=1e-5, force_fallback=True)
    jax.block_until_ready(y_fb)
    err_fb = float(jnp.max(jnp.abs(y_fb - y_ref)))
    assert jnp.allclose(y_fb, y_ref, atol=1e-4, rtol=1e-4), f"fallback max_err={err_fb}"

    # 3) Ragged-edge fallback: rows/columns not multiples of the tiles
    #    (exercises masked edge blocks + the in-kernel column mask) by forcing
    #    a tiny per-block element budget.
    k1, k2, k3 = jax.random.split(key, 3)
    N2, C2, H2, W2 = 2, 5, 20, 15
    x_r = jax.random.normal(k1, (N2, C2, H2, W2), jnp.float32) * 3.0 + 1.5
    g_r = jax.random.normal(k2, (1, C2, 1, 1), jnp.float32)
    b_r = jax.random.normal(k3, (1, C2, 1, 1), jnp.float32)
    y_r = _bin_fallback(
        x_r.reshape(N2, C2, H2 * W2),
        g_r.reshape(C2, 1), b_r.reshape(C2, 1),
        0.5, 1e-5, max_block_elems=1600,
    ).reshape(N2, C2, H2, W2)
    jax.block_until_ready(y_r)
    y_r_ref = _reference_bin(x_r, g_r, b_r, 0.5, 1e-5)
    err_r = float(jnp.max(jnp.abs(y_r - y_r_ref)))
    assert jnp.allclose(y_r, y_r_ref, atol=1e-4, rtol=1e-4), f"ragged max_err={err_r}"

    print("KERNEL_OK")
</pallas_src>

<mosaic_0001>
module attributes {stable_mosaic.version = 11 : i64} {
  func.func @_fused_bin_kernel(%arg0: i32, %arg1: memref<2x4x256xf32, #tpu.memory_space<vmem>>, %arg2: memref<4x1xf32, #tpu.memory_space<vmem>>, %arg3: memref<4x1xf32, #tpu.memory_space<vmem>>, %arg4: memref<2x4x256xf32, #tpu.memory_space<vmem>>) attributes {dimension_semantics = [#tpu.dimension_semantics<parallel>], iteration_bounds = array<i64: 1>, scalar_prefetch = 0 : i64, scratch_operands = 0 : i64, tpu.core_type = #tpu.core_type<tc>, window_params = [{transform_indices = @transform_0, window_bounds = array<i64: 2, 4, 256>}, {transform_indices = @transform_1, window_bounds = array<i64: 4, 1>}, {transform_indices = @transform_2, window_bounds = array<i64: 4, 1>}, {transform_indices = @transform_3, window_bounds = array<i64: 2, 4, 256>}]} {
    %c0 = arith.constant 0 : index
    %c0_0 = arith.constant 0 : index
    %c0_1 = arith.constant 0 : index
    %0 = vector.load %arg1[%c0, %c0_0, %c0_1] : memref<2x4x256xf32, #tpu.memory_space<vmem>>, vector<2x4x256xf32>
    %cst = arith.constant dense<0.000000e+00> : vector<2x4xf32>
    %1 = vector.multi_reduction <add>, %0, %cst [2] : vector<2x4x256xf32> to vector<2x4xf32>
    %2 = vector.shape_cast %1 : vector<2x4xf32> to vector<2x4x1xf32>
    %cst_2 = arith.constant 3.906250e-03 : f32
    %3 = vector.broadcast %cst_2 : f32 to vector<2x4x1xf32>
    %4 = arith.mulf %2, %3 : vector<2x4x1xf32>
    %cst_3 = arith.constant dense<0.000000e+00> : vector<4x1xf32>
    %5 = vector.multi_reduction <add>, %2, %cst_3 [0] : vector<2x4x1xf32> to vector<4x1xf32>
    %6 = vector.shape_cast %5 : vector<4x1xf32> to vector<1x4x1xf32>
    %cst_4 = arith.constant 0.001953125 : f32
    %7 = vector.broadcast %cst_4 : f32 to vector<1x4x1xf32>
    %8 = arith.mulf %6, %7 : vector<1x4x1xf32>
    %9 = vector.broadcast %4 : vector<2x4x1xf32> to vector<2x4x256xf32>
    %10 = arith.subf %0, %9 : vector<2x4x256xf32>
    %11 = arith.mulf %10, %10 : vector<2x4x256xf32>
    %cst_5 = arith.constant dense<0.000000e+00> : vector<2x4xf32>
    %12 = vector.multi_reduction <add>, %11, %cst_5 [2] : vector<2x4x256xf32> to vector<2x4xf32>
    %13 = vector.shape_cast %12 : vector<2x4xf32> to vector<2x4x1xf32>
    %cst_6 = arith.constant 3.906250e-03 : f32
    %14 = vector.broadcast %cst_6 : f32 to vector<2x4x1xf32>
    %15 = arith.mulf %13, %14 : vector<2x4x1xf32>
    %16 = vector.broadcast %8 : vector<1x4x1xf32> to vector<2x4x1xf32>
    %17 = arith.subf %4, %16 : vector<2x4x1xf32>
    %18 = arith.mulf %17, %17 : vector<2x4x1xf32>
    %19 = arith.addf %15, %18 : vector<2x4x1xf32>
    %cst_7 = arith.constant dense<0.000000e+00> : vector<4x1xf32>
    %20 = vector.multi_reduction <add>, %19, %cst_7 [0] : vector<2x4x1xf32> to vector<4x1xf32>
    %21 = vector.shape_cast %20 : vector<4x1xf32> to vector<1x4x1xf32>
    %cst_8 = arith.constant 5.000000e-01 : f32
    %22 = vector.broadcast %cst_8 : f32 to vector<1x4x1xf32>
    %23 = arith.mulf %21, %22 : vector<1x4x1xf32>
    %cst_9 = arith.constant 1.00392163 : f32
    %24 = vector.broadcast %cst_9 : f32 to vector<2x4x1xf32>
    %25 = arith.mulf %15, %24 : vector<2x4x1xf32>
    %cst_10 = arith.constant 9.99999974E-6 : f32
    %26 = vector.broadcast %cst_10 : f32 to vector<2x4x1xf32>
    %27 = arith.addf %25, %26 : vector<2x4x1xf32>
    %28 = math.rsqrt %27 : vector<2x4x1xf32>
    %cst_11 = arith.constant 9.99999974E-6 : f32
    %29 = vector.broadcast %cst_11 : f32 to vector<1x4x1xf32>
    %30 = arith.addf %23, %29 : vector<1x4x1xf32>
    %31 = math.rsqrt %30 : vector<1x4x1xf32>
    %c0_12 = arith.constant 0 : index
    %c0_13 = arith.constant 0 : index
    %32 = vector.load %arg2[%c0_12, %c0_13] : memref<4x1xf32, #tpu.memory_space<vmem>>, vector<4x1xf32>
    %33 = vector.shape_cast %32 : vector<4x1xf32> to vector<1x4x1xf32>
    %c0_14 = arith.constant 0 : index
    %c0_15 = arith.constant 0 : index
    %34 = vector.load %arg3[%c0_14, %c0_15] : memref<4x1xf32, #tpu.memory_space<vmem>>, vector<4x1xf32>
    %35 = vector.shape_cast %34 : vector<4x1xf32> to vector<1x4x1xf32>
    %cst_16 = arith.constant 5.000000e-01 : f32
    %36 = vector.broadcast %cst_16 : f32 to vector<1x4x1xf32>
    %37 = arith.mulf %36, %31 : vector<1x4x1xf32>
    %cst_17 = arith.constant 5.000000e-01 : f32
    %38 = vector.broadcast %cst_17 : f32 to vector<2x4x1xf32>
    %39 = arith.mulf %38, %28 : vector<2x4x1xf32>
    %40 = vector.broadcast %37 : vector<1x4x1xf32> to vector<2x4x1xf32>
    %41 = arith.addf %40, %39 : vector<2x4x1xf32>
    %42 = vector.broadcast %33 : vector<1x4x1xf32> to vector<2x4x1xf32>
    %43 = arith.mulf %42, %41 : vector<2x4x1xf32>
    %cst_18 = arith.constant 5.000000e-01 : f32
    %44 = vector.broadcast %cst_18 : f32 to vector<1x4x1xf32>
    %45 = arith.mulf %44, %8 : vector<1x4x1xf32>
    %46 = arith.mulf %45, %31 : vector<1x4x1xf32>
    %cst_19 = arith.constant 5.000000e-01 : f32
    %47 = vector.broadcast %cst_19 : f32 to vector<2x4x1xf32>
    %48 = arith.mulf %47, %4 : vector<2x4x1xf32>
    %49 = arith.mulf %48, %28 : vector<2x4x1xf32>
    %50 = vector.broadcast %46 : vector<1x4x1xf32> to vector<2x4x1xf32>
    %51 = arith.addf %50, %49 : vector<2x4x1xf32>
    %52 = vector.broadcast %33 : vector<1x4x1xf32> to vector<2x4x1xf32>
    %53 = arith.mulf %52, %51 : vector<2x4x1xf32>
    %54 = vector.broadcast %35 : vector<1x4x1xf32> to vector<2x4x1xf32>
    %55 = arith.subf %54, %53 : vector<2x4x1xf32>
    %56 = vector.broadcast %43 : vector<2x4x1xf32> to vector<2x4x256xf32>
    %57 = arith.mulf %0, %56 : vector<2x4x256xf32>
    %58 = vector.broadcast %55 : vector<2x4x1xf32> to vector<2x4x256xf32>
    %59 = arith.addf %57, %58 : vector<2x4x256xf32>
    %c0_20 = arith.constant 0 : index
    %c0_21 = arith.constant 0 : index
    %c0_22 = arith.constant 0 : index
    %60 = vector.load %arg4[%c0_20, %c0_21, %c0_22] : memref<2x4x256xf32, #tpu.memory_space<vmem>>, vector<2x4x256xf32>
    tpu.vector_store %arg4[%c0_20, %c0_21, %c0_22], %59 {strides = array<i32>} : memref<2x4x256xf32, #tpu.memory_space<vmem>>, vector<2x4x256xf32>,
    return
  }
  func.func @transform_0(%arg0: i32) -> (i32, i32, i32) {
    %c0_i32 = arith.constant 0 : i32
    %c0_i32_0 = arith.constant 0 : i32
    %c0_i32_1 = arith.constant 0 : i32
    return %c0_i32, %arg0, %c0_i32_0 : i32, i32, i32
  }
  func.func @transform_1(%arg0: i32) -> (i32, i32) {
    %c0_i32 = arith.constant 0 : i32
    %c0_i32_0 = arith.constant 0 : i32
    return %arg0, %c0_i32 : i32, i32
  }
  func.func @transform_2(%arg0: i32) -> (i32, i32) {
    %c0_i32 = arith.constant 0 : i32
    %c0_i32_0 = arith.constant 0 : i32
    return %arg0, %c0_i32 : i32, i32
  }
  func.func @transform_3(%arg0: i32) -> (i32, i32, i32) {
    %c0_i32 = arith.constant 0 : i32
    %c0_i32_0 = arith.constant 0 : i32
    %c0_i32_1 = arith.constant 0 : i32
    return %c0_i32, %arg0, %c0_i32_0 : i32, i32, i32
  }
}

</mosaic_0001>

<llo_original>
// kernel: batch_instance_norm.1
$region0: #{batch_instance_norm.1}
  #allocation0 [shape = 'u32[]', space=smem, size = 0x4, offset = 0x4, fixed_abs, tag = 'smem constant byte address 0x4 - core index']
  #allocation1 [shape = 'u32[72,128]{1,0:T(1,128)}', space=vmem, size = 0x9000, scoped, tag = 'internal scratch']
  %s0 = inlined_call_operand.vmem [shape: f32[2,4,256], index: 0, kind: input, shape index: {}]
  %s1 = inlined_call_operand.vmem [shape: f32[4,1], index: 1, kind: input, shape index: {}]
  %s2 = inlined_call_operand.vmem [shape: f32[4,1], index: 2, kind: input, shape index: {}]
  %s3 = inlined_call_operand.vmem [shape: f32[2,4,256], index: 3, kind: output, shape index: {}]
  %s4 = sld [smem:[#allocation0]]
  $region22: #{batch_instance_norm.1} parent=0
    _
  %s6 = ssub.s32 1, %s4
  %s7 = scalar_select 0, %s6, %s4
  // Predicated region
  $region2: #{batch_instance_norm.1} parent=0 // pred_check
    _
  $region3: #{batch_instance_norm.1} parent=0 // pred_check_branch
    %9 = sbr.rel (0) target = $region5
  $region4: #{batch_instance_norm.1} parent=0 // pred_region
    _
  $region5: #{batch_instance_norm.1} parent=0 // pred_fallthru
    _
  // Predicated region
  $region6: #{batch_instance_norm.1} parent=0 // pred_check
    _
  $region7: #{batch_instance_norm.1} parent=0 // pred_check_branch
    %11 = sbr.rel (0) target = $region9
  $region8: #{batch_instance_norm.1} parent=0 // pred_region
    _
  $region9: #{batch_instance_norm.1} parent=0 // pred_fallthru
    _
  // Predicated region
  $region10: #{batch_instance_norm.1} parent=0 // pred_check
    _
  $region11: #{batch_instance_norm.1} parent=0 // pred_check_branch
    %13 = sbr.rel (0) target = $region13
  $region12: #{batch_instance_norm.1} parent=0 // pred_region
    _
  $region13: #{batch_instance_norm.1} parent=0 // pred_fallthru
    _
  %v14 = vld [vmem:[%s0] sm:$0xff]
  %v15 = vld [vmem:[%s0 + $0x8] sm:$0xff]
  %18 = vst [vmem:[#allocation1] ss:$2 sm:$0xff] %v14
  %v19 = vld.sshfl [vmem:[#allocation1] sm:$0xff pattern:$0x75316420]
  %v20 = vld.sshfl [vmem:[#allocation1 + $0x8] sm:$0xff pattern:$0x75316420]
  %s21 = scalar_lea.vmem [#allocation1], 16
  %22 = vst [vmem:[%s21] ss:$2 sm:$0xff] %v15
  %v23 = vld.sshfl [vmem:[#allocation1 + $0x10] sm:$0xff pattern:$0x75316420]
  %v24 = vld.sshfl [vmem:[#allocation1 + $0x18] sm:$0xff pattern:$0x75316420]
  %vm29 = vcmask 1043456
  %v30 = vsel %vm29, %v19, 0.0
  %v31 = vsel %vm29, %v20, 0.0
  %v32 = vadd.f32 %v30, %v31
  %33 = vadd.xlane.f32.xlu0 %v32
  %v34 = vpop.xlane.xlu0 %33
  %v35 = vsel %vm29, %v23, 0.0
  %v36 = vsel %vm29, %v24, 0.0
  %v37 = vadd.f32 %v35, %v36
  %38 = vadd.xlane.f32.xlu0 %v37
  %v39 = vpop.xlane.xlu0 %38
  %v40 = vmul.f32 %v34, 0.00390625
  %v41 = vmul.f32 %v39, 0.00390625
  %v42 = vsel %vm29, %v34, 0.0
  %v43 = vsel %vm29, %v39, 0.0
  %v44 = vadd.f32 %v42, %v43
  %v45 = vmul.f32 %v44, 0.001953125
  %v49 = vunpack.c.l.s4 839922192
  %v50 = vunpack.c.0.s8 %v49
  %v51 = vperm.slane %v40, %v50
  %v53 = vunpack.c.l.s4 839922192
  %v54 = vunpack.c.0.s8 %v53
  %v55 = vperm.slane %v41, %v54
  %v58 = vsub.f32 %v14, %v51
  %v59 = vsub.f32 %v15, %v55
  %v60 = vmul.f32 %v58, %v58
  %v61 = vmul.f32 %v59, %v59
  %64 = vst [vmem:[#allocation1] ss:$2 sm:$0xff] %v60
  %v65 = vld.sshfl [vmem:[#allocation1] sm:$0xff pattern:$0x75316420]
  %v66 = vld.sshfl [vmem:[#allocation1 + $0x8] sm:$0xff pattern:$0x75316420]
  %s67 = scalar_lea.vmem [#allocation1], 16
  %68 = vst [vmem:[%s67] ss:$2 sm:$0xff] %v61
  %v69 = vld.sshfl [vmem:[#allocation1 + $0x10] sm:$0xff pattern:$0x75316420]
  %v70 = vld.sshfl [vmem:[#allocation1 + $0x18] sm:$0xff pattern:$0x75316420]
  %v75 = vsel %vm29, %v65, 0.0
  %v76 = vsel %vm29, %v66, 0.0
  %v77 = vadd.f32 %v75, %v76
  %78 = vadd.xlane.f32.xlu0 %v77
  %v79 = vpop.xlane.xlu0 %78
  %v80 = vsel %vm29, %v69, 0.0
  %v81 = vsel %vm29, %v70, 0.0
  %v82 = vadd.f32 %v80, %v81
  %83 = vadd.xlane.f32.xlu0 %v82
  %v84 = vpop.xlane.xlu0 %83
  %v85 = vmul.f32 %v79, 0.00390625
  %v86 = vmul.f32 %v84, 0.00390625
  %v87 = vsub.f32 %v40, %v45
  %v88 = vsub.f32 %v41, %v45
  %v89 = vmul.f32 %v87, %v87
  %v90 = vmul.f32 %v88, %v88
  %v91 = vadd.f32 %v85, %v89
  %v92 = vadd.f32 %v86, %v90
  %v93 = vsel %vm29, %v91, 0.0
  %v94 = vsel %vm29, %v92, 0.0
  %v95 = vadd.f32 %v93, %v94
  %v96 = vmul.f32 %v95, 0.5
  %v97 = vmul.f32 %v85, 1.0039216
  %v98 = vmul.f32 %v86, 1.0039216
  %v99 = vadd.f32 %v97, 1e-05
  %v100 = vadd.f32 %v98, 1e-05
  %v101 = vrsqrt.pop %v99
  %v102 = vmul.f32 %v101, %v99
  %v103 = vmul.f32 %v102, %v101
  %v104 = vmul.f32 0.5, %v103
  %v105 = vsub.f32 1.5, %v104
  %v106 = vmul.f32 %v101, %v105
  %vm107 = vweird.f32 %v99
  %vm108 = vweird.f32 %v101
  %vm109 = vmor %vm107, %vm108
  %v110 = vsel %vm109, %v101, %v106
  %v111 = vrsqrt.pop %v100
  %v112 = vmul.f32 %v111, %v100
  %v113 = vmul.f32 %v112, %v111
  %v114 = vmul.f32 0.5, %v113
  %v115 = vsub.f32 1.5, %v114
  %v116 = vmul.f32 %v111, %v115
  %vm117 = vweird.f32 %v100
  %vm118 = vweird.f32 %v111
  %vm119 = vmor %vm117, %vm118
  %v120 = vsel %vm119, %v111, %v116
  %v121 = vadd.f32 %v96, 1e-05
  %v122 = vrsqrt.pop %v121
  %v123 = vmul.f32 %v122, %v121
  %v124 = vmul.f32 %v123, %v122
  %v125 = vmul.f32 0.5, %v124
  %v126 = vsub.f32 1.5, %v125
  %v127 = vmul.f32 %v122, %v126
  %vm128 = vweird.f32 %v121
  %vm129 = vweird.f32 %v122
  %vm130 = vmor %vm128, %vm129
  %v131 = vsel %vm130, %v122, %v127
  %v132 = vld [vmem:[%s1] sm:$0xf]
  %v133 = vld [vmem:[%s2] sm:$0xf]
  %v134 = vmul.f32 %v131, 0.5
  %v135 = vmul.f32 %v110, 0.5
  %v136 = vmul.f32 %v120, 0.5
  %v137 = vadd.f32 %v134, %v135
  %v138 = vadd.f32 %v134, %v136
  %v139 = vmul.f32 %v132, %v137
  %v140 = vmul.f32 %v132, %v138
  %v141 = vmul.f32 %v45, 0.5
  %v142 = vmul.f32 %v141, %v131
  %v143 = vmul.f32 %v40, 0.5
  %v144 = vmul.f32 %v41, 0.5
  %v145 = vmul.f32 %v143, %v110
  %v146 = vmul.f32 %v144, %v120
  %v147 = vadd.f32 %v142, %v145
  %v148 = vadd.f32 %v142, %v146
  %v149 = vmul.f32 %v132, %v147
  %v150 = vmul.f32 %v132, %v148
  %v151 = vsub.f32 %v133, %v149
  %v152 = vsub.f32 %v133, %v150
  %154 = vset.pattern.permute.xlu0 0
  %155 = vperm.xlu0 %154, %v139
  %v156 = vpop.permute.xlu0 %155
  %158 = vset.pattern.permute.xlu0 0
  %159 = vperm.xlu0 %158, %v140
  %v160 = vpop.permute.xlu0 %159
  %v162 = vunpack.c.l.s4 839922192
  %v163 = vunpack.c.0.s8 %v162
  %v164 = vperm.slane %v156, %v163
  %v166 = vunpack.c.l.s4 839922192
  %v167 = vunpack.c.0.s8 %v166
  %v168 = vperm.slane %v160, %v167
  %v171 = vmul.f32 %v14, %v164
  %v172 = vmul.f32 %v15, %v168
  %174 = vset.pattern.permute.xlu0 0
  %175 = vperm.xlu0 %174, %v151
  %v176 = vpop.permute.xlu0 %175
  %178 = vset.pattern.permute.xlu0 0
  %179 = vperm.xlu0 %178, %v152
  %v180 = vpop.permute.xlu0 %179
  %v182 = vunpack.c.l.s4 839922192
  %v183 = vunpack.c.0.s8 %v182
  %v184 = vperm.slane %v176, %v183
  %v186 = vunpack.c.l.s4 839922192
  %v187 = vunpack.c.0.s8 %v186
  %v188 = vperm.slane %v180, %v187
  %v191 = vadd.f32 %v171, %v184
  %v192 = vadd.f32 %v172, %v188
  %193 = vst [vmem:[%s3] sm:$0xff] %v191
  %194 = vst [vmem:[%s3 + $0x8] sm:$0xff] %v192
  // Predicated region
  $region14: #{batch_instance_norm.1} parent=0 // pred_check
    _
  $region15: #{batch_instance_norm.1} parent=0 // pred_check_branch
    %196 = sbr.rel (0) target = $region17
  $region16: #{batch_instance_norm.1} parent=0 // pred_region
    _
  $region17: #{batch_instance_norm.1} parent=0 // pred_fallthru
    _
  // Predicated region
  $region18: #{batch_instance_norm.1} parent=0 // pred_check
    _
  $region19: #{batch_instance_norm.1} parent=0 // pred_check_branch
    %198 = sbr.rel (0) target = $region21
  $region20: #{batch_instance_norm.1} parent=0 // pred_region
    _
  $region21: #{batch_instance_norm.1} parent=0 // pred_fallthru
    _

</llo_original>
